<compile_context>
chip_gen: v5e
topology: v5e:2x2
jax: 0.10.0
libtpu: 0.0.40
codegen_flags: <defaults>
</compile_context>

<pallas_src>
import jax
import jax.numpy as jnp
from jax.experimental import pallas as pl
from jax.experimental.pallas import tpu as pltpu


def _round_up(n, m):
    return ((n + m - 1) // m) * m


def dynamics_kernel(x_ref,
                    w1_ref, b1_ref, w2_ref, b2_ref,
                    w3_ref, b3_ref, w4_ref, b4_ref,
                    wh_ref, bh_ref,
                    out_ref):
    # 4-layer ReLU trunk: bf16 MXU operands, f32 accumulation + f32 epilogue.
    h = jnp.dot(x_ref[...], w1_ref[...], preferred_element_type=jnp.float32)
    h = jnp.maximum(h + b1_ref[...], 0.0)
    h = jnp.dot(h.astype(jnp.bfloat16), w2_ref[...],
                preferred_element_type=jnp.float32)
    h = jnp.maximum(h + b2_ref[...], 0.0)
    h = jnp.dot(h.astype(jnp.bfloat16), w3_ref[...],
                preferred_element_type=jnp.float32)
    h = jnp.maximum(h + b3_ref[...], 0.0)
    h = jnp.dot(h.astype(jnp.bfloat16), w4_ref[...],
                preferred_element_type=jnp.float32)
    h = jnp.maximum(h + b4_ref[...], 0.0)
    # Fused heads: [delta_mean | logstd | reward | done_logit | zero-pad],
    # lane-dense 128-wide output -> single unmasked store per sublane group.
    out = jnp.dot(h.astype(jnp.bfloat16), wh_ref[...],
                  preferred_element_type=jnp.float32)
    out_ref[...] = (out + bh_ref[...]).astype(out_ref.dtype)


def prepare_params(params):
    """One-time conversion of module params into kernel params.

    * Fuses the four head weights/biases into one matmul, zero-padded to a
      lane-dense 128-wide output.
    * Casts all matmul weights to bf16 (MXU operands); biases stay f32.
    Returns (kernel_params, n_out, total_out, padded_out).
    """
    (w1, b1, w2, b2, w3, b3, w4, b4,
     wm, bm, wl, bl, wr, br, wd, bd) = params
    n_out = wm.shape[1]

    wh = jnp.concatenate([wm, wl, wr, wd], axis=1)
    bh = jnp.concatenate([bm, bl, br, bd], axis=1)
    total_out = wh.shape[1]                       # 2*out + 2
    padded_out = _round_up(total_out, 128)        # lane-dense output
    if padded_out != total_out:
        wh = jnp.pad(wh, ((0, 0), (0, padded_out - total_out)))
        bh = jnp.pad(bh, ((0, 0), (0, padded_out - total_out)))

    bf16 = lambda a: a.astype(jnp.bfloat16)
    kernel_params = (bf16(w1), b1, bf16(w2), b2, bf16(w3), b3, bf16(w4), b4,
                     bf16(wh), bh)
    return kernel_params, n_out, total_out, padded_out


def dynamics_forward(x, prepared, *, block_b=1024):
    """x: (B, input_dim) float32; prepared = prepare_params(params).

    Returns (delta_mean, logstd, reward, done_logit) with shapes
    (B, out), (B, out), (B, 1), (B, 1) — matching DynamicsNetwork.forward.
    """
    kernel_params, n_out, total_out, padded_out = prepared
    B, n_in = x.shape

    # ---- Batch tiling: sublane-aligned (multiple of 8) tiles ---------------
    tb = min(block_b, _round_up(B, 8))
    tb = max(8, _round_up(tb, 8))
    b_pad = _round_up(B, tb)
    # Guarantee >= 2 grid steps when there is enough work, so v7x's two
    # TensorCores both get a share of the batch (no-op on v5e/v6e).
    if b_pad // tb == 1 and b_pad >= 16:
        tb = _round_up(b_pad // 2, 8)
        b_pad = _round_up(B, tb)

    x = x.astype(jnp.bfloat16)
    if b_pad != B:
        x = jnp.pad(x, ((0, b_pad - B), (0, 0)))

    # Constant block index (0, 0) for every parameter -> weights are DMA'd
    # once and stay resident in VMEM across all batch-grid steps.
    weight_specs = [pl.BlockSpec(w.shape, lambda i: (0, 0))
                    for w in kernel_params]

    out = pl.pallas_call(
        dynamics_kernel,
        out_shape=jax.ShapeDtypeStruct((b_pad, padded_out), jnp.float32),
        grid_spec=pltpu.PrefetchScalarGridSpec(
            num_scalar_prefetch=0,
            grid=(b_pad // tb,),
            in_specs=[pl.BlockSpec((tb, n_in), lambda i: (i, 0))] + weight_specs,
            out_specs=pl.BlockSpec((tb, padded_out), lambda i: (i, 0)),
        ),
        compiler_params=pltpu.CompilerParams(
            dimension_semantics=("parallel",),  # megacore batch split on v7x
        ),
    )(x, *kernel_params)

    out = out[:B, :total_out]
    delta_mean = out[:, :n_out]
    logstd = out[:, n_out:2 * n_out]
    reward = out[:, 2 * n_out:2 * n_out + 1]
    done_logit = out[:, 2 * n_out + 1:2 * n_out + 2]
    return delta_mean, logstd, reward, done_logit


def init_params(key, input_dim, hidden_dim, output_dim):
    """Deterministic synthetic params, PyTorch Linear init, stored as (in, out)."""
    ks = jax.random.split(key, 16)

    def lin(kw, kb, fan_in, fan_out):
        bound = 1.0 / jnp.sqrt(fan_in)
        w = jax.random.uniform(kw, (fan_in, fan_out), jnp.float32, -bound, bound)
        b = jax.random.uniform(kb, (1, fan_out), jnp.float32, -bound, bound)
        return w, b

    w1, b1 = lin(ks[0], ks[1], input_dim, hidden_dim)
    w2, b2 = lin(ks[2], ks[3], hidden_dim, hidden_dim)
    w3, b3 = lin(ks[4], ks[5], hidden_dim, hidden_dim)
    w4, b4 = lin(ks[6], ks[7], hidden_dim, hidden_dim)
    wm, bm = lin(ks[8], ks[9], hidden_dim, output_dim)
    wl, bl = lin(ks[10], ks[11], hidden_dim, output_dim)
    wr, br = lin(ks[12], ks[13], hidden_dim, 1)
    wd, bd = lin(ks[14], ks[15], hidden_dim, 1)
    return (w1, b1, w2, b2, w3, b3, w4, b4, wm, bm, wl, bl, wr, br, wd, bd)


def reference_forward_f32(x, params):
    """Pure f32 reference matching the PyTorch module."""
    (w1, b1, w2, b2, w3, b3, w4, b4,
     wm, bm, wl, bl, wr, br, wd, bd) = params
    h = jnp.maximum(x @ w1 + b1, 0.0)
    h = jnp.maximum(h @ w2 + b2, 0.0)
    h = jnp.maximum(h @ w3 + b3, 0.0)
    h = jnp.maximum(h @ w4 + b4, 0.0)
    return (h @ wm + bm, h @ wl + bl, h @ wr + br, h @ wd + bd)


def reference_forward_bf16(x, params):
    """Reference mimicking the kernel's bf16 MXU operands / f32 epilogue."""
    (w1, b1, w2, b2, w3, b3, w4, b4,
     wm, bm, wl, bl, wr, br, wd, bd) = params
    bf = lambda a: a.astype(jnp.bfloat16)
    dot = lambda a, b: jnp.dot(bf(a), bf(b), preferred_element_type=jnp.float32)
    h = jnp.maximum(dot(x, w1) + b1, 0.0)
    h = jnp.maximum(dot(h, w2) + b2, 0.0)
    h = jnp.maximum(dot(h, w3) + b3, 0.0)
    h = jnp.maximum(dot(h, w4) + b4, 0.0)
    return (dot(h, wm) + bm, dot(h, wl) + bl, dot(h, wr) + br, dot(h, wd) + bd)


def _check(outs, x, params):
    refs_bf16 = reference_forward_bf16(x, params)
    refs_f32 = reference_forward_f32(x, params)
    for o, rb, rf in zip(outs, refs_bf16, refs_f32):
        assert o.shape == rf.shape
        # apples-to-apples vs. bf16-operand reference
        assert jnp.allclose(o, rb, atol=2e-2, rtol=2e-2)
        # sanity vs. the pure-f32 PyTorch semantics
        assert jnp.allclose(o, rf, atol=1e-1, rtol=1e-1)


if __name__ == "__main__":
    key = jax.random.PRNGKey(0)
    kx, kx2, kx3, kp = jax.random.split(key, 4)

    input_dim, hidden_dim, output_dim = 16, 256, 8   # e.g. obs+act -> delta_obs
    params = init_params(kp, input_dim, hidden_dim, output_dim)
    prepared = prepare_params(params)                # one-time head fusion / bf16

    # Case 1: tiny batch, single grid step.
    x = jax.random.normal(kx, (8, input_dim), jnp.float32)
    outs = dynamics_forward(x, prepared)
    jax.block_until_ready(outs)
    _check(outs, x, params)

    # Case 2: batch not a multiple of the tile -> padding + grid > 1.
    x2 = jax.random.normal(kx2, (41, input_dim), jnp.float32)
    outs2 = dynamics_forward(x2, prepared, block_b=16)
    jax.block_until_ready(outs2)
    _check(outs2, x2, params)

    # Case 3: default tile with the 2-grid-step (megacore) split heuristic.
    x3 = jax.random.normal(kx3, (100, input_dim), jnp.float32)
    outs3 = dynamics_forward(x3, prepared)
    jax.block_until_ready(outs3)
    _check(outs3, x3, params)

    print("KERNEL_OK")
</pallas_src>

<mosaic_0001>
module attributes {stable_mosaic.version = 11 : i64} {
  func.func @dynamics_kernel(%arg0: i32, %arg1: memref<8x16xbf16, #tpu.memory_space<vmem>>, %arg2: memref<16x256xbf16, #tpu.memory_space<vmem>>, %arg3: memref<1x256xf32, #tpu.memory_space<vmem>>, %arg4: memref<256x256xbf16, #tpu.memory_space<vmem>>, %arg5: memref<1x256xf32, #tpu.memory_space<vmem>>, %arg6: memref<256x256xbf16, #tpu.memory_space<vmem>>, %arg7: memref<1x256xf32, #tpu.memory_space<vmem>>, %arg8: memref<256x256xbf16, #tpu.memory_space<vmem>>, %arg9: memref<1x256xf32, #tpu.memory_space<vmem>>, %arg10: memref<256x128xbf16, #tpu.memory_space<vmem>>, %arg11: memref<1x128xf32, #tpu.memory_space<vmem>>, %arg12: memref<8x128xf32, #tpu.memory_space<vmem>>) attributes {dimension_semantics = [#tpu.dimension_semantics<parallel>], iteration_bounds = array<i64: 1>, scalar_prefetch = 0 : i64, scratch_operands = 0 : i64, tpu.core_type = #tpu.core_type<tc>, window_params = [{transform_indices = @transform_0, window_bounds = array<i64: 8, 16>}, {pipeline_mode = #tpu.pipeline_mode<synchronous>, transform_indices = @transform_1, window_bounds = array<i64: 16, 256>}, {pipeline_mode = #tpu.pipeline_mode<synchronous>, transform_indices = @transform_2, window_bounds = array<i64: 1, 256>}, {pipeline_mode = #tpu.pipeline_mode<synchronous>, transform_indices = @transform_3, window_bounds = array<i64: 256, 256>}, {pipeline_mode = #tpu.pipeline_mode<synchronous>, transform_indices = @transform_4, window_bounds = array<i64: 1, 256>}, {pipeline_mode = #tpu.pipeline_mode<synchronous>, transform_indices = @transform_5, window_bounds = array<i64: 256, 256>}, {pipeline_mode = #tpu.pipeline_mode<synchronous>, transform_indices = @transform_6, window_bounds = array<i64: 1, 256>}, {pipeline_mode = #tpu.pipeline_mode<synchronous>, transform_indices = @transform_7, window_bounds = array<i64: 256, 256>}, {pipeline_mode = #tpu.pipeline_mode<synchronous>, transform_indices = @transform_8, window_bounds = array<i64: 1, 256>}, {pipeline_mode = #tpu.pipeline_mode<synchronous>, transform_indices = @transform_9, window_bounds = array<i64: 256, 128>}, {pipeline_mode = #tpu.pipeline_mode<synchronous>, transform_indices = @transform_10, window_bounds = array<i64: 1, 128>}, {transform_indices = @transform_11, window_bounds = array<i64: 8, 128>}]} {
    %c0 = arith.constant 0 : index
    %c0_0 = arith.constant 0 : index
    %0 = vector.load %arg1[%c0, %c0_0] : memref<8x16xbf16, #tpu.memory_space<vmem>>, vector<8x16xbf16>
    %c0_1 = arith.constant 0 : index
    %c0_2 = arith.constant 0 : index
    %1 = vector.load %arg2[%c0_1, %c0_2] : memref<16x256xbf16, #tpu.memory_space<vmem>>, vector<16x256xbf16>
    %cst = arith.constant dense<0.000000e+00> : vector<8x256xf32>
    %2 = tpu.matmul %0, %1, %cst {dimension_numbers = #tpu.dot_dimension_numbers<[1], [0], [0], [1], [0, 0, 1, 1], [], []>} : vector<8x16xbf16>, vector<16x256xbf16>, vector<8x256xf32> -> vector<8x256xf32>
    %c0_3 = arith.constant 0 : index
    %c0_4 = arith.constant 0 : index
    %3 = vector.load %arg3[%c0_3, %c0_4] : memref<1x256xf32, #tpu.memory_space<vmem>>, vector<1x256xf32>
    %4 = vector.broadcast %3 : vector<1x256xf32> to vector<8x256xf32>
    %5 = arith.addf %2, %4 : vector<8x256xf32>
    %cst_5 = arith.constant 0.000000e+00 : f32
    %6 = vector.broadcast %cst_5 : f32 to vector<8x256xf32>
    %7 = arith.maximumf %5, %6 : vector<8x256xf32>
    %8 = arith.truncf %7 : vector<8x256xf32> to vector<8x256xbf16>
    %c0_6 = arith.constant 0 : index
    %c0_7 = arith.constant 0 : index
    %9 = vector.load %arg4[%c0_6, %c0_7] : memref<256x256xbf16, #tpu.memory_space<vmem>>, vector<256x256xbf16>
    %cst_8 = arith.constant dense<0.000000e+00> : vector<8x256xf32>
    %10 = tpu.matmul %8, %9, %cst_8 {dimension_numbers = #tpu.dot_dimension_numbers<[1], [0], [0], [1], [0, 0, 1, 1], [], []>} : vector<8x256xbf16>, vector<256x256xbf16>, vector<8x256xf32> -> vector<8x256xf32>
    %c0_9 = arith.constant 0 : index
    %c0_10 = arith.constant 0 : index
    %11 = vector.load %arg5[%c0_9, %c0_10] : memref<1x256xf32, #tpu.memory_space<vmem>>, vector<1x256xf32>
    %12 = vector.broadcast %11 : vector<1x256xf32> to vector<8x256xf32>
    %13 = arith.addf %10, %12 : vector<8x256xf32>
    %cst_11 = arith.constant 0.000000e+00 : f32
    %14 = vector.broadcast %cst_11 : f32 to vector<8x256xf32>
    %15 = arith.maximumf %13, %14 : vector<8x256xf32>
    %16 = arith.truncf %15 : vector<8x256xf32> to vector<8x256xbf16>
    %c0_12 = arith.constant 0 : index
    %c0_13 = arith.constant 0 : index
    %17 = vector.load %arg6[%c0_12, %c0_13] : memref<256x256xbf16, #tpu.memory_space<vmem>>, vector<256x256xbf16>
    %cst_14 = arith.constant dense<0.000000e+00> : vector<8x256xf32>
    %18 = tpu.matmul %16, %17, %cst_14 {dimension_numbers = #tpu.dot_dimension_numbers<[1], [0], [0], [1], [0, 0, 1, 1], [], []>} : vector<8x256xbf16>, vector<256x256xbf16>, vector<8x256xf32> -> vector<8x256xf32>
    %c0_15 = arith.constant 0 : index
    %c0_16 = arith.constant 0 : index
    %19 = vector.load %arg7[%c0_15, %c0_16] : memref<1x256xf32, #tpu.memory_space<vmem>>, vector<1x256xf32>
    %20 = vector.broadcast %19 : vector<1x256xf32> to vector<8x256xf32>
    %21 = arith.addf %18, %20 : vector<8x256xf32>
    %cst_17 = arith.constant 0.000000e+00 : f32
    %22 = vector.broadcast %cst_17 : f32 to vector<8x256xf32>
    %23 = arith.maximumf %21, %22 : vector<8x256xf32>
    %24 = arith.truncf %23 : vector<8x256xf32> to vector<8x256xbf16>
    %c0_18 = arith.constant 0 : index
    %c0_19 = arith.constant 0 : index
    %25 = vector.load %arg8[%c0_18, %c0_19] : memref<256x256xbf16, #tpu.memory_space<vmem>>, vector<256x256xbf16>
    %cst_20 = arith.constant dense<0.000000e+00> : vector<8x256xf32>
    %26 = tpu.matmul %24, %25, %cst_20 {dimension_numbers = #tpu.dot_dimension_numbers<[1], [0], [0], [1], [0, 0, 1, 1], [], []>} : vector<8x256xbf16>, vector<256x256xbf16>, vector<8x256xf32> -> vector<8x256xf32>
    %c0_21 = arith.constant 0 : index
    %c0_22 = arith.constant 0 : index
    %27 = vector.load %arg9[%c0_21, %c0_22] : memref<1x256xf32, #tpu.memory_space<vmem>>, vector<1x256xf32>
    %28 = vector.broadcast %27 : vector<1x256xf32> to vector<8x256xf32>
    %29 = arith.addf %26, %28 : vector<8x256xf32>
    %cst_23 = arith.constant 0.000000e+00 : f32
    %30 = vector.broadcast %cst_23 : f32 to vector<8x256xf32>
    %31 = arith.maximumf %29, %30 : vector<8x256xf32>
    %32 = arith.truncf %31 : vector<8x256xf32> to vector<8x256xbf16>
    %c0_24 = arith.constant 0 : index
    %c0_25 = arith.constant 0 : index
    %33 = vector.load %arg10[%c0_24, %c0_25] : memref<256x128xbf16, #tpu.memory_space<vmem>>, vector<256x128xbf16>
    %cst_26 = arith.constant dense<0.000000e+00> : vector<8x128xf32>
    %34 = tpu.matmul %32, %33, %cst_26 {dimension_numbers = #tpu.dot_dimension_numbers<[1], [0], [0], [1], [0, 0, 1, 1], [], []>} : vector<8x256xbf16>, vector<256x128xbf16>, vector<8x128xf32> -> vector<8x128xf32>
    %c0_27 = arith.constant 0 : index
    %c0_28 = arith.constant 0 : index
    %35 = vector.load %arg11[%c0_27, %c0_28] : memref<1x128xf32, #tpu.memory_space<vmem>>, vector<1x128xf32>
    %36 = vector.broadcast %35 : vector<1x128xf32> to vector<8x128xf32>
    %37 = arith.addf %34, %36 : vector<8x128xf32>
    %c0_29 = arith.constant 0 : index
    %c0_30 = arith.constant 0 : index
    %38 = vector.load %arg12[%c0_29, %c0_30] : memref<8x128xf32, #tpu.memory_space<vmem>>, vector<8x128xf32>
    tpu.vector_store %arg12[%c0_29, %c0_30], %37 {strides = array<i32>} : memref<8x128xf32, #tpu.memory_space<vmem>>, vector<8x128xf32>,
    return
  }
  func.func @transform_0(%arg0: i32) -> (i32, i32) {
    %c0_i32 = arith.constant 0 : i32
    %c0_i32_0 = arith.constant 0 : i32
    return %arg0, %c0_i32 : i32, i32
  }
  func.func @transform_1(%arg0: i32) -> (i32, i32) {
    %c0_i32 = arith.constant 0 : i32
    %c0_i32_0 = arith.constant 0 : i32
    %c0_i32_1 = arith.constant 0 : i32
    return %c0_i32, %c0_i32_0 : i32, i32
  }
  func.func @transform_2(%arg0: i32) -> (i32, i32) {
    %c0_i32 = arith.constant 0 : i32
    %c0_i32_0 = arith.constant 0 : i32
    %c0_i32_1 = arith.constant 0 : i32
    return %c0_i32, %c0_i32_0 : i32, i32
  }
  func.func @transform_3(%arg0: i32) -> (i32, i32) {
    %c0_i32 = arith.constant 0 : i32
    %c0_i32_0 = arith.constant 0 : i32
    %c0_i32_1 = arith.constant 0 : i32
    return %c0_i32, %c0_i32_0 : i32, i32
  }
  func.func @transform_4(%arg0: i32) -> (i32, i32) {
    %c0_i32 = arith.constant 0 : i32
    %c0_i32_0 = arith.constant 0 : i32
    %c0_i32_1 = arith.constant 0 : i32
    return %c0_i32, %c0_i32_0 : i32, i32
  }
  func.func @transform_5(%arg0: i32) -> (i32, i32) {
    %c0_i32 = arith.constant 0 : i32
    %c0_i32_0 = arith.constant 0 : i32
    %c0_i32_1 = arith.constant 0 : i32
    return %c0_i32, %c0_i32_0 : i32, i32
  }
  func.func @transform_6(%arg0: i32) -> (i32, i32) {
    %c0_i32 = arith.constant 0 : i32
    %c0_i32_0 = arith.constant 0 : i32
    %c0_i32_1 = arith.constant 0 : i32
    return %c0_i32, %c0_i32_0 : i32, i32
  }
  func.func @transform_7(%arg0: i32) -> (i32, i32) {
    %c0_i32 = arith.constant 0 : i32
    %c0_i32_0 = arith.constant 0 : i32
    %c0_i32_1 = arith.constant 0 : i32
    return %c0_i32, %c0_i32_0 : i32, i32
  }
  func.func @transform_8(%arg0: i32) -> (i32, i32) {
    %c0_i32 = arith.constant 0 : i32
    %c0_i32_0 = arith.constant 0 : i32
    %c0_i32_1 = arith.constant 0 : i32
    return %c0_i32, %c0_i32_0 : i32, i32
  }
  func.func @transform_9(%arg0: i32) -> (i32, i32) {
    %c0_i32 = arith.constant 0 : i32
    %c0_i32_0 = arith.constant 0 : i32
    %c0_i32_1 = arith.constant 0 : i32
    return %c0_i32, %c0_i32_0 : i32, i32
  }
  func.func @transform_10(%arg0: i32) -> (i32, i32) {
    %c0_i32 = arith.constant 0 : i32
    %c0_i32_0 = arith.constant 0 : i32
    %c0_i32_1 = arith.constant 0 : i32
    return %c0_i32, %c0_i32_0 : i32, i32
  }
  func.func @transform_11(%arg0: i32) -> (i32, i32) {
    %c0_i32 = arith.constant 0 : i32
    %c0_i32_0 = arith.constant 0 : i32
    return %arg0, %c0_i32 : i32, i32
  }
}

</mosaic_0001>

<llo_original>
// kernel: tpu_custom_call.1
$region0: #{tpu_custom_call.1}
  #allocation0 [shape = 'u32[]', space=smem, size = 0x4, offset = 0x4, fixed_abs, tag = 'smem constant byte address 0x4 - core index']
  #allocation1 [shape = 'u32[72,128]{1,0:T(1,128)}', space=vmem, size = 0x9000, scoped, tag = 'internal scratch']
  %s0 = inlined_call_operand.hbm [shape: bf16[8,16], index: 0, kind: input, shape index: {}]
  %s1 = inlined_call_operand.hbm [shape: bf16[16,256], index: 1, kind: input, shape index: {}]
  %s2 = inlined_call_operand.hbm [shape: f32[1,256], index: 2, kind: input, shape index: {}]
  %s3 = inlined_call_operand.hbm [shape: bf16[256,256], index: 3, kind: input, shape index: {}]
  %s4 = inlined_call_operand.vmem [shape: f32[1,256], index: 4, kind: input, shape index: {}]
  %s5 = inlined_call_operand.hbm [shape: bf16[256,256], index: 5, kind: input, shape index: {}]
  %s6 = inlined_call_operand.vmem [shape: f32[1,256], index: 6, kind: input, shape index: {}]
  %s7 = inlined_call_operand.hbm [shape: bf16[256,256], index: 7, kind: input, shape index: {}]
  %s8 = inlined_call_operand.vmem [shape: f32[1,256], index: 8, kind: input, shape index: {}]
  %s9 = inlined_call_operand.hbm [shape: bf16[256,128], index: 9, kind: input, shape index: {}]
  %s10 = inlined_call_operand.vmem [shape: f32[1,128], index: 10, kind: input, shape index: {}]
  %s11 = inlined_call_operand.hbm [shape: f32[8,128], index: 11, kind: output, shape index: {}]
  %s12 = sld [smem:[#allocation0]]
  $region82: #{tpu_custom_call.1} parent=0
    _
  %s14 = ssub.s32 1, %s12
  %s15 = scalar_select 0, %s14, %s12
  $region1: #{tpu_custom_call.1} parent=0
    #allocation2 [shape = 'u8[2048]{0}', space=vmem, size = 0x800, scoped, tag = 'input window, operand 0, single buffered']
    #allocation3 [shape = 's32[1]{0}', space=sflag, size = 0x4, scoped, tag = 'scoped memory for tpu_custom_call.1']
    #allocation4 [shape = 's32[1]{0}', space=sflag, size = 0x4, scoped, tag = 'scoped memory for tpu_custom_call.1']
    #allocation5 [shape = 'u8[8192]{0}', space=vmem, size = 0x2000, scoped, tag = 'input window, operand 1, single buffered']
    #allocation6 [shape = 's32[1]{0}', space=sflag, size = 0x4, scoped, tag = 'scoped memory for tpu_custom_call.1']
    #allocation7 [shape = 'u8[1024]{0}', space=vmem, size = 0x400, scoped, tag = 'input window, operand 2, single buffered']
    #allocation8 [shape = 'u8[131072]{0}', space=vmem, size = 0x20000, scoped, tag = 'input window, operand 3, single buffered']
    #allocation9 [shape = 's32[1]{0}', space=sflag, size = 0x4, scoped, tag = 'scoped memory for tpu_custom_call.1']
    #allocation10 [shape = 'u8[131072]{0}', space=vmem, size = 0x20000, scoped, tag = 'input window, operand 5, single buffered']
    #allocation11 [shape = 'u8[131072]{0}', space=vmem, size = 0x20000, scoped, tag = 'input window, operand 7, single buffered']
    #allocation12 [shape = 's32[1]{0}', space=sflag, size = 0x4, scoped, tag = 'scoped memory for tpu_custom_call.1']
    #allocation13 [shape = 'u8[65536]{0}', space=vmem, size = 0x10000, scoped, tag = 'input window, operand 9, single buffered']
    #allocation14 [shape = 'u8[4096]{0}', space=vmem, size = 0x1000, scoped, tag = 'output window, operand 0, single buffered']
    %16 = vsyncpa [#allocation3], 0
    %17 = vsyncpa [#allocation6], 0
    %18 = vsyncpa [#allocation9], 0
    %19 = vsyncpa [#allocation12], 0
    %20 = vsyncpa [#allocation4], 0
    // Predicated region
    $region2: #{tpu_custom_call.1} parent=1 // pred_check
      _
    $region3: #{tpu_custom_call.1} parent=1 // pred_check_branch
      %22 = sbr.rel (0) target = $region5
    $region4: #{tpu_custom_call.1} parent=1 // pred_region
      %24 = vsyncadd [#allocation3], 0
      %s26 = sshll.u32 %s0, 4
      %s27 = int_to_ptr.hbm [resolvable:$true] %s26
      %s28 = sshll.u32 [#allocation2], 4
      %s29 = int_to_ptr.vmem [resolvable:$true] %s28
      %31 = dma.hbm_to_vmem [thread:$0]  %s27, 64, %s29, [#allocation3]
    $region5: #{tpu_custom_call.1} parent=1 // pred_fallthru
      _
    // Predicated region
    $region6: #{tpu_custom_call.1} parent=1 // pred_check
      _
    $region7: #{tpu_custom_call.1} parent=1 // pred_check_branch
      %33 = sbr.rel (0) target = $region9
    $region8: #{tpu_custom_call.1} parent=1 // pred_region
      %35 = vsyncadd [#allocation6], 0
      %s36 = sshll.u32 %s1, 4
      %s37 = int_to_ptr.hbm [resolvable:$true] %s36
      %s38 = sshll.u32 [#allocation5], 4
      %s39 = int_to_ptr.vmem [resolvable:$true] %s38
      %44 = dma.hbm_to_vmem [thread:$0]  %s37, 256, %s39, [#allocation6], 128, 128, 8
    $region9: #{tpu_custom_call.1} parent=1 // pred_fallthru
      _
    // Predicated region
    $region10: #{tpu_custom_call.1} parent=1 // pred_check
      _
    $region11: #{tpu_custom_call.1} parent=1 // pred_check_branch
      %46 = sbr.rel (0) target = $region13
    $region12: #{tpu_custom_call.1} parent=1 // pred_region
      %48 = vsyncadd [#allocation6], 0
      %s50 = sshll.u32 %s2, 4
      %s51 = int_to_ptr.hbm [resolvable:$true] %s50
      %s52 = sshll.u32 [#allocation7], 4
      %s53 = int_to_ptr.vmem [resolvable:$true] %s52
      %55 = dma.hbm_to_vmem [thread:$0]  %s51, 32, %s53, [#allocation6]
    $region13: #{tpu_custom_call.1} parent=1 // pred_fallthru
      _
    // Predicated region
    $region14: #{tpu_custom_call.1} parent=1 // pred_check
      _
    $region15: #{tpu_custom_call.1} parent=1 // pred_check_branch
      %57 = sbr.rel (0) target = $region17
    $region16: #{tpu_custom_call.1} parent=1 // pred_region
      %59 = vsyncadd [#allocation9], 0
      %s60 = sshll.u32 %s3, 4
      %s61 = int_to_ptr.hbm [resolvable:$true] %s60
      %s62 = sshll.u32 [#allocation8], 4
      %s63 = int_to_ptr.vmem [resolvable:$true] %s62
      %68 = dma.hbm_to_vmem [thread:$0]  %s61, 4096, %s63, [#allocation9], 128, 128, 8
    $region17: #{tpu_custom_call.1} parent=1 // pred_fallthru
      _
    // Predicated region
    $region18: #{tpu_custom_call.1} parent=1 // pred_check
      _
    $region19: #{tpu_custom_call.1} parent=1 // pred_check_branch
      %70 = sbr.rel (0) target = $region21
    $region20: #{tpu_custom_call.1} parent=1 // pred_region
      _
    $region21: #{tpu_custom_call.1} parent=1 // pred_fallthru
      _
    // Predicated region
    $region22: #{tpu_custom_call.1} parent=1 // pred_check
      _
    $region23: #{tpu_custom_call.1} parent=1 // pred_check_branch
      %72 = sbr.rel (0) target = $region25
    $region24: #{tpu_custom_call.1} parent=1 // pred_region
      %74 = vsyncadd [#allocation9], 0
      %s75 = sshll.u32 %s5, 4
      %s76 = int_to_ptr.hbm [resolvable:$true] %s75
      %s77 = sshll.u32 [#allocation10], 4
      %s78 = int_to_ptr.vmem [resolvable:$true] %s77
      %83 = dma.hbm_to_vmem [thread:$0]  %s76, 4096, %s78, [#allocation9], 128, 128, 8
    $region25: #{tpu_custom_call.1} parent=1 // pred_fallthru
      _
    // Predicated region
    $region26: #{tpu_custom_call.1} parent=1 // pred_check
      _
    $region27: #{tpu_custom_call.1} parent=1 // pred_check_branch
      %85 = sbr.rel (0) target = $region29
    $region28: #{tpu_custom_call.1} parent=1 // pred_region
      _
    $region29: #{tpu_custom_call.1} parent=1 // pred_fallthru
      _
    // Predicated region
    $region30: #{tpu_custom_call.1} parent=1 // pred_check
      _
    $region31: #{tpu_custom_call.1} parent=1 // pred_check_branch
      %87 = sbr.rel (0) target = $region33
    $region32: #{tpu_custom_call.1} parent=1 // pred_region
      %89 = vsyncadd [#allocation12], 0
      %s90 = sshll.u32 %s7, 4
      %s91 = int_to_ptr.hbm [resolvable:$true] %s90
      %s92 = sshll.u32 [#allocation11], 4
      %s93 = int_to_ptr.vmem [resolvable:$true] %s92
      %98 = dma.hbm_to_vmem [thread:$0]  %s91, 4096, %s93, [#allocation12], 128, 128, 8
    $region33: #{tpu_custom_call.1} parent=1 // pred_fallthru
      _
    // Predicated region
    $region34: #{tpu_custom_call.1} parent=1 // pred_check
      _
    $region35: #{tpu_custom_call.1} parent=1 // pred_check_branch
      %100 = sbr.rel (0) target = $region37
    $region36: #{tpu_custom_call.1} parent=1 // pred_region
      _
    $region37: #{tpu_custom_call.1} parent=1 // pred_fallthru
      _
    // Predicated region
    $region38: #{tpu_custom_call.1} parent=1 // pred_check
      _
    $region39: #{tpu_custom_call.1} parent=1 // pred_check_branch
      %102 = sbr.rel (0) target = $region41
    $region40: #{tpu_custom_call.1} parent=1 // pred_region
      %104 = vsyncadd [#allocation12], 0
      %s105 = sshll.u32 %s9, 4
      %s106 = int_to_ptr.hbm [resolvable:$true] %s105
      %s107 = sshll.u32 [#allocation13], 4
      %s108 = int_to_ptr.vmem [resolvable:$true] %s107
      %113 = dma.hbm_to_vmem [thread:$0]  %s106, 2048, %s108, [#allocation12], 64, 64, 4
    $region41: #{tpu_custom_call.1} parent=1 // pred_fallthru
      _
    // Predicated region
    $region42: #{tpu_custom_call.1} parent=1 // pred_check
      _
    $region43: #{tpu_custom_call.1} parent=1 // pred_check_branch
      %115 = sbr.rel (0) target = $region45
    $region44: #{tpu_custom_call.1} parent=1 // pred_region
      _
    $region45: #{tpu_custom_call.1} parent=1 // pred_fallthru
      _
    // Predicated region
    $region46: #{tpu_custom_call.1} parent=1 // pred_check
      _
    $region47: #{tpu_custom_call.1} parent=1 // pred_check_branch
      %117 = sbr.rel (0) target = $region49
    $region48: #{tpu_custom_call.1} parent=1 // pred_region
      %119 = dma.done [#allocation3], 64
    $region49: #{tpu_custom_call.1} parent=1 // pred_fallthru
      _
    // Predicated region
    $region50: #{tpu_custom_call.1} parent=1 // pred_check
      _
    $region51: #{tpu_custom_call.1} parent=1 // pred_check_branch
      %121 = sbr.rel (0) target = $region53
    $region52: #{tpu_custom_call.1} parent=1 // pred_region
      %123 = dma.done [#allocation6], 256
    $region53: #{tpu_custom_call.1} parent=1 // pred_fallthru
      _
    // Predicated region
    $region54: #{tpu_custom_call.1} parent=1 // pred_check
      _
    $region55: #{tpu_custom_call.1} parent=1 // pred_check_branch
      %125 = sbr.rel (0) target = $region57
    $region56: #{tpu_custom_call.1} parent=1 // pred_region
      %127 = dma.done [#allocation6], 32
    $region57: #{tpu_custom_call.1} parent=1 // pred_fallthru
      _
    // Predicated region
    $region58: #{tpu_custom_call.1} parent=1 // pred_check
      _
    $region59: #{tpu_custom_call.1} parent=1 // pred_check_branch
      %129 = sbr.rel (0) target = $region61
    $region60: #{tpu_custom_call.1} parent=1 // pred_region
      %131 = dma.done [#allocation9], 4096
    $region61: #{tpu_custom_call.1} parent=1 // pred_fallthru
      _
    // Predicated region
    $region62: #{tpu_custom_call.1} parent=1 // pred_check
      _
    $region63: #{tpu_custom_call.1} parent=1 // pred_check_branch
      %133 = sbr.rel (0) target = $region65
    $region64: #{tpu_custom_call.1} parent=1 // pred_region
      %135 = dma.done [#allocation9], 4096
    $region65: #{tpu_custom_call.1} parent=1 // pred_fallthru
      _
    // Predicated region
    $region66: #{tpu_custom_call.1} parent=1 // pred_check
      _
    $region67: #{tpu_custom_call.1} parent=1 // pred_check_branch
      %137 = sbr.rel (0) target = $region69
    $region68: #{tpu_custom_call.1} parent=1 // pred_region
      %139 = dma.done [#allocation12], 4096
    $region69: #{tpu_custom_call.1} parent=1 // pred_fallthru
      _
    // Predicated region
    $region70: #{tpu_custom_call.1} parent=1 // pred_check
      _
    $region71: #{tpu_custom_call.1} parent=1 // pred_check_branch
      %141 = sbr.rel (0) target = $region73
    $region72: #{tpu_custom_call.1} parent=1 // pred_region
      %143 = dma.done [#allocation12], 2048
    $region73: #{tpu_custom_call.1} parent=1 // pred_fallthru
      _
    %v145 = vld [vmem:[#allocation2] sm:$0xf]
    %v146 = vld [vmem:[#allocation5] sm:$0xff]
    %v147 = vld [vmem:[#allocation5 + $0x8] sm:$0xff]
    %v148 = vld [vmem:[#allocation7] sm:$0x3]
    %v150 = vperm.slane %v148, 0
    %v151 = vperm.slane %v148, 1
    %v156 = vunpack.c.l.b16 %v146
    %v157 = vunpack.c.h.b16 %v146
    %v158 = vunpack.c.l.b16 %v147
    %v159 = vunpack.c.h.b16 %v147
    %v160 = vpack.c.b16 %v158, %v156
    %v161 = vpack.c.b16 %v159, %v157
    %vm164 = vcmask 130048
    %v166 = vsel %vm164, %v145, 0
    %168 = vmatpush.bf16.msra.mxu0 0
    %169 = vmatpush.bf16.msra.mxu0 0
    %170 = vmatpush.bf16.msra.mxu0 0
    %171 = vmatpush.bf16.msra.mxu0 0
    %172 = vmatpush.bf16.msra.mxu0 0
    %173 = vmatpush.bf16.msra.mxu0 0
    %174 = vmatpush.bf16.msra.mxu0 0
    %175 = vmatpush.bf16.msra.mxu0 %v160
    %176 = vmatmul.bf16.gmra.mxu0 %v166
    %v177 = vpop.f32.mrf.mxu0
    %v178 = vadd.f32 %v150, %v177
    %v179 = vpop.f32.mrf.mxu0
    %180 = vdwg.mxu0
    %181 = vmatpush.bf16.msra.mxu0 0
    %182 = vmatpush.bf16.msra.mxu0 0
    %183 = vmatpush.bf16.msra.mxu0 0
    %184 = vmatpush.bf16.msra.mxu0 0
    %185 = vmatpush.bf16.msra.mxu0 0
    %186 = vmatpush.bf16.msra.mxu0 0
    %187 = vmatpush.bf16.msra.mxu0 0
    %188 = vmatpush.bf16.msra.mxu0 %v161
    %189 = vmatmul.bf16.gmra.mxu0 %v166
    %v190 = vpop.f32.mrf.mxu0
    %v191 = vadd.f32 %v151, %v190
    %v192 = vpop.f32.mrf.mxu0
    %193 = vdwg.mxu0
    %v194 = vmax.f32 %v178, 0.0
    %v195 = vmax.f32 %v191, 0.0
    %v196 = vpack.c.bf16 %v194, %v194
    %v197 = vpack.c.bf16 %v195, %v195
    %v198 = vld [vmem:[#allocation8] sm:$0xff]
    %v199 = vld [vmem:[#allocation8 + $0x8] sm:$0xff]
    %v200 = vld [vmem:[#allocation8 + $0x10] sm:$0xff]
    %v201 = vld [vmem:[#allocation8 + $0x18] sm:$0xff]
    %v202 = vld [vmem:[#allocation8 + $0x20] sm:$0xff]
    %v203 = vld [vmem:[#allocation8 + $0x28] sm:$0xff]
    %v204 = vld [vmem:[#allocation8 + $0x30] sm:$0xff]
    %v205 = vld [vmem:[#allocation8 + $0x38] sm:$0xff]
    %v206 = vld [vmem:[#allocation8 + $0x40] sm:$0xff]
    %v207 = vld [vmem:[#allocation8 + $0x48] sm:$0xff]
    %v208 = vld [vmem:[#allocation8 + $0x50] sm:$0xff]
    %v209 = vld [vmem:[#allocation8 + $0x58] sm:$0xff]
    %v210 = vld [vmem:[#allocation8 + $0x60] sm:$0xff]
    %v211 = vld [vmem:[#allocation8 + $0x68] sm:$0xff]
    %v212 = vld [vmem:[#allocation8 + $0x70] sm:$0xff]
    %v213 = vld [vmem:[#allocation8 + $0x78] sm:$0xff]
    %v214 = vld [vmem:[#allocation8 + $0x80] sm:$0xff]
    %v215 = vld [vmem:[#allocation8 + $0x88] sm:$0xff]
    %v216 = vld [vmem:[#allocation8 + $0x90] sm:$0xff]
    %v217 = vld [vmem:[#allocation8 + $0x98] sm:$0xff]
    %v218 = vld [vmem:[#allocation8 + $0xa0] sm:$0xff]
    %v219 = vld [vmem:[#allocation8 + $0xa8] sm:$0xff]
    %v220 = vld [vmem:[#allocation8 + $0xb0] sm:$0xff]
    %v221 = vld [vmem:[#allocation8 + $0xb8] sm:$0xff]
    %v222 = vld [vmem:[#allocation8 + $0xc0] sm:$0xff]
    %v223 = vld [vmem:[#allocation8 + $0xc8] sm:$0xff]
    %v224 = vld [vmem:[#allocation8 + $0xd0] sm:$0xff]
    %v225 = vld [vmem:[#allocation8 + $0xd8] sm:$0xff]
    %v226 = vld [vmem:[#allocation8 + $0xe0] sm:$0xff]
    %v227 = vld [vmem:[#allocation8 + $0xe8] sm:$0xff]
    %v228 = vld [vmem:[#allocation8 + $0xf0] sm:$0xff]
    %v229 = vld [vmem:[#allocation8 + $0xf8] sm:$0xff]
    %v230 = vld [vmem:[%s4] sm:$0x3]
    %v232 = vperm.slane %v230, 0
    %v233 = vperm.slane %v230, 1
    %v268 = vunpack.c.l.b16 %v198
    %v269 = vunpack.c.h.b16 %v198
    %v270 = vunpack.c.l.b16 %v199
    %v271 = vunpack.c.h.b16 %v199
    %v272 = vunpack.c.l.b16 %v200
    %v273 = vunpack.c.h.b16 %v200
    %v274 = vunpack.c.l.b16 %v201
    %v275 = vunpack.c.h.b16 %v201
    %v276 = vunpack.c.l.b16 %v202
    %v277 = vunpack.c.h.b16 %v202
    %v278 = vunpack.c.l.b16 %v203
    %v279 = vunpack.c.h.b16 %v203
    %v280 = vunpack.c.l.b16 %v204
    %v281 = vunpack.c.h.b16 %v204
    %v282 = vunpack.c.l.b16 %v205
    %v283 = vunpack.c.h.b16 %v205
    %v284 = vunpack.c.l.b16 %v206
    %v285 = vunpack.c.h.b16 %v206
    %v286 = vunpack.c.l.b16 %v207
    %v287 = vunpack.c.h.b16 %v207
    %v288 = vunpack.c.l.b16 %v208
    %v289 = vunpack.c.h.b16 %v208
    %v290 = vunpack.c.l.b16 %v209
    %v291 = vunpack.c.h.b16 %v209
    %v292 = vunpack.c.l.b16 %v210
    %v293 = vunpack.c.h.b16 %v210
    %v294 = vunpack.c.l.b16 %v211
    %v295 = vunpack.c.h.b16 %v211
    %v296 = vunpack.c.l.b16 %v212
    %v297 = vunpack.c.h.b16 %v212
    %v298 = vunpack.c.l.b16 %v213
    %v299 = vunpack.c.h.b16 %v213
    %v300 = vunpack.c.l.b16 %v214
    %v301 = vunpack.c.h.b16 %v214
    %v302 = vunpack.c.l.b16 %v215
    %v303 = vunpack.c.h.b16 %v215
    %v304 = vunpack.c.l.b16 %v216
    %v305 = vunpack.c.h.b16 %v216
    %v306 = vunpack.c.l.b16 %v217
    %v307 = vunpack.c.h.b16 %v217
    %v308 = vunpack.c.l.b16 %v218
    %v309 = vunpack.c.h.b16 %v218
    %v310 = vunpack.c.l.b16 %v219
    %v311 = vunpack.c.h.b16 %v219
    %v312 = vunpack.c.l.b16 %v220
    %v313 = vunpack.c.h.b16 %v220
    %v314 = vunpack.c.l.b16 %v221
    %v315 = vunpack.c.h.b16 %v221
    %v316 = vunpack.c.l.b16 %v222
    %v317 = vunpack.c.h.b16 %v222
    %v318 = vunpack.c.l.b16 %v223
    %v319 = vunpack.c.h.b16 %v223
    %v320 = vunpack.c.l.b16 %v224
    %v321 = vunpack.c.h.b16 %v224
    %v322 = vunpack.c.l.b16 %v225
    %v323 = vunpack.c.h.b16 %v225
    %v324 = vunpack.c.l.b16 %v226
    %v325 = vunpack.c.h.b16 %v226
    %v326 = vunpack.c.l.b16 %v227
    %v327 = vunpack.c.h.b16 %v227
    %v328 = vunpack.c.l.b16 %v228
    %v329 = vunpack.c.h.b16 %v228
    %v330 = vunpack.c.l.b16 %v229
    %v331 = vunpack.c.h.b16 %v229
    %v332 = vpack.c.b16 %v270, %v268
    %v333 = vpack.c.b16 %v271, %v269
    %v334 = vpack.c.b16 %v274, %v272
    %v335 = vpack.c.b16 %v275, %v273
    %v336 = vpack.c.b16 %v278, %v276
    %v337 = vpack.c.b16 %v279, %v277
    %v338 = vpack.c.b16 %v282, %v280
    %v339 = vpack.c.b16 %v283, %v281
    %v340 = vpack.c.b16 %v286, %v284
    %v341 = vpack.c.b16 %v287, %v285
    %v342 = vpack.c.b16 %v290, %v288
    %v343 = vpack.c.b16 %v291, %v289
    %v344 = vpack.c.b16 %v294, %v292
    %v345 = vpack.c.b16 %v295, %v293
    %v346 = vpack.c.b16 %v298, %v296
    %v347 = vpack.c.b16 %v299, %v297
    %v348 = vpack.c.b16 %v302, %v300
    %v349 = vpack.c.b16 %v303, %v301
    %v350 = vpack.c.b16 %v306, %v304
    %v351 = vpack.c.b16 %v307, %v305
    %v352 = vpack.c.b16 %v310, %v308
    %v353 = vpack.c.b16 %v311, %v309
    %v354 = vpack.c.b16 %v314, %v312
    %v355 = vpack.c.b16 %v315, %v313
    %v356 = vpack.c.b16 %v318, %v316
    %v357 = vpack.c.b16 %v319, %v317
    %v358 = vpack.c.b16 %v322, %v320
    %v359 = vpack.c.b16 %v323, %v321
    %v360 = vpack.c.b16 %v326, %v324
    %v361 = vpack.c.b16 %v327, %v325
    %v362 = vpack.c.b16 %v330, %v328
    %v363 = vpack.c.b16 %v331, %v329
    %396 = vmatpush.bf16.msra.mxu0 %v346
    %397 = vmatpush.bf16.msra.mxu0 %v344
    %398 = vmatpush.bf16.msra.mxu0 %v342
    %399 = vmatpush.bf16.msra.mxu0 %v340
    %400 = vmatpush.bf16.msra.mxu0 %v338
    %401 = vmatpush.bf16.msra.mxu0 %v336
    %402 = vmatpush.bf16.msra.mxu0 %v334
    %403 = vmatpush.bf16.msra.mxu0 %v332
    %404 = vmatmul.bf16.gmra.mxu0 %v196
    %v405 = vpop.f32.mrf.mxu0
    %v406 = vadd.f32 %v232, %v405
    %v407 = vpop.f32.mrf.mxu0
    %408 = vdwg.mxu0
    %409 = vmatpush.bf16.msra.mxu0 %v362
    %410 = vmatpush.bf16.msra.mxu0 %v360
    %411 = vmatpush.bf16.msra.mxu0 %v358
    %412 = vmatpush.bf16.msra.mxu0 %v356
    %413 = vmatpush.bf16.msra.mxu0 %v354
    %414 = vmatpush.bf16.msra.mxu0 %v352
    %415 = vmatpush.bf16.msra.mxu0 %v350
    %416 = vmatpush.bf16.msra.mxu0 %v348
    %417 = vmatmul.bf16.gmra.mxu0 %v197
    %v418 = vpop.f32.mrf.mxu0
    %v419 = vadd.f32 %v406, %v418
    %v420 = vpop.f32.mrf.mxu0
    %421 = vdwg.mxu0
    %422 = vmatpush.bf16.msra.mxu0 %v347
    %423 = vmatpush.bf16.msra.mxu0 %v345
    %424 = vmatpush.bf16.msra.mxu0 %v343
    %425 = vmatpush.bf16.msra.mxu0 %v341
    %426 = vmatpush.bf16.msra.mxu0 %v339
    %427 = vmatpush.bf16.msra.mxu0 %v337
    %428 = vmatpush.bf16.msra.mxu0 %v335
    %429 = vmatpush.bf16.msra.mxu0 %v333
    %430 = vmatmul.bf16.gmra.mxu0 %v196
    %v431 = vpop.f32.mrf.mxu0
    %v432 = vadd.f32 %v233, %v431
    %v433 = vpop.f32.mrf.mxu0
    %434 = vdwg.mxu0
    %435 = vmatpush.bf16.msra.mxu0 %v363
    %436 = vmatpush.bf16.msra.mxu0 %v361
    %437 = vmatpush.bf16.msra.mxu0 %v359
    %438 = vmatpush.bf16.msra.mxu0 %v357
    %439 = vmatpush.bf16.msra.mxu0 %v355
    %440 = vmatpush.bf16.msra.mxu0 %v353
    %441 = vmatpush.bf16.msra.mxu0 %v351
    %442 = vmatpush.bf16.msra.mxu0 %v349
    %443 = vmatmul.bf16.gmra.mxu0 %v197
    %v444 = vpop.f32.mrf.mxu0
    %v445 = vadd.f32 %v432, %v444
    %v446 = vpop.f32.mrf.mxu0
    %447 = vdwg.mxu0
    %v448 = vmax.f32 %v419, 0.0
    %v449 = vmax.f32 %v445, 0.0
    %v450 = vpack.c.bf16 %v448, %v448
    %v451 = vpack.c.bf16 %v449, %v449
    %v452 = vld [vmem:[#allocation10] sm:$0xff]
    %v453 = vld [vmem:[#allocation10 + $0x8] sm:$0xff]
    %v454 = vld [vmem:[#allocation10 + $0x10] sm:$0xff]
    %v455 = vld [vmem:[#allocation10 + $0x18] sm:$0xff]
    %v456 = vld [vmem:[#allocation10 + $0x20] sm:$0xff]
    %v457 = vld [vmem:[#allocation10 + $0x28] sm:$0xff]
    %v458 = vld [vmem:[#allocation10 + $0x30] sm:$0xff]
    %v459 = vld [vmem:[#allocation10 + $0x38] sm:$0xff]
    %v460 = vld [vmem:[#allocation10 + $0x40] sm:$0xff]
    %v461 = vld [vmem:[#allocation10 + $0x48] sm:$0xff]
    %v462 = vld [vmem:[#allocation10 + $0x50] sm:$0xff]
    %v463 = vld [vmem:[#allocation10 + $0x58] sm:$0xff]
    %v464 = vld [vmem:[#allocation10 + $0x60] sm:$0xff]
    %v465 = vld [vmem:[#allocation10 + $0x68] sm:$0xff]
    %v466 = vld [vmem:[#allocation10 + $0x70] sm:$0xff]
    %v467 = vld [vmem:[#allocation10 + $0x78] sm:$0xff]
    %v468 = vld [vmem:[#allocation10 + $0x80] sm:$0xff]
    %v469 = vld [vmem:[#allocation10 + $0x88] sm:$0xff]
    %v470 = vld [vmem:[#allocation10 + $0x90] sm:$0xff]
    %v471 = vld [vmem:[#allocation10 + $0x98] sm:$0xff]
    %v472 = vld [vmem:[#allocation10 + $0xa0] sm:$0xff]
    %v473 = vld [vmem:[#allocation10 + $0xa8] sm:$0xff]
    %v474 = vld [vmem:[#allocation10 + $0xb0] sm:$0xff]
    %v475 = vld [vmem:[#allocation10 + $0xb8] sm:$0xff]
    %v476 = vld [vmem:[#allocation10 + $0xc0] sm:$0xff]
    %v477 = vld [vmem:[#allocation10 + $0xc8] sm:$0xff]
    %v478 = vld [vmem:[#allocation10 + $0xd0] sm:$0xff]
    %v479 = vld [vmem:[#allocation10 + $0xd8] sm:$0xff]
    %v480 = vld [vmem:[#allocation10 + $0xe0] sm:$0xff]
    %v481 = vld [vmem:[#allocation10 + $0xe8] sm:$0xff]
    %v482 = vld [vmem:[#allocation10 + $0xf0] sm:$0xff]
    %v483 = vld [vmem:[#allocation10 + $0xf8] sm:$0xff]
    %v484 = vld [vmem:[%s6] sm:$0x3]
    %v486 = vperm.slane %v484, 0
    %v487 = vperm.slane %v484, 1
    %v522 = vunpack.c.l.b16 %v452
    %v523 = vunpack.c.h.b16 %v452
    %v524 = vunpack.c.l.b16 %v453
    %v525 = vunpack.c.h.b16 %v453
    %v526 = vunpack.c.l.b16 %v454
    %v527 = vunpack.c.h.b16 %v454
    %v528 = vunpack.c.l.b16 %v455
    %v529 = vunpack.c.h.b16 %v455
    %v530 = vunpack.c.l.b16 %v456
    %v531 = vunpack.c.h.b16 %v456
    %v532 = vunpack.c.l.b16 %v457
    %v533 = vunpack.c.h.b16 %v457
    %v534 = vunpack.c.l.b16 %v458
    %v535 = vunpack.c.h.b16 %v458
    %v536 = vunpack.c.l.b16 %v459
    %v537 = vunpack.c.h.b16 %v459
    %v538 = vunpack.c.l.b16 %v460
    %v539 = vunpack.c.h.b16 %v460
    %v540 = vunpack.c.l.b16 %v461
    %v541 = vunpack.c.h.b16 %v461
    %v542 = vunpack.c.l.b16 %v462
    %v543 = vunpack.c.h.b16 %v462
    %v544 = vunpack.c.l.b16 %v463
    %v545 = vunpack.c.h.b16 %v463
    %v546 = vunpack.c.l.b16 %v464
    %v547 = vunpack.c.h.b16 %v464
    %v548 = vunpack.c.l.b16 %v465
    %v549 = vunpack.c.h.b16 %v465
    %v550 = vunpack.c.l.b16 %v466
    %v551 = vunpack.c.h.b16 %v466
    %v552 = vunpack.c.l.b16 %v467
    %v553 = vunpack.c.h.b16 %v467
    %v554 = vunpack.c.l.b16 %v468
    %v555 = vunpack.c.h.b16 %v468
    %v556 = vunpack.c.l.b16 %v469
    %v557 = vunpack.c.h.b16 %v469
    %v558 = vunpack.c.l.b16 %v470
    %v559 = vunpack.c.h.b16 %v470
    %v560 = vunpack.c.l.b16 %v471
    %v561 = vunpack.c.h.b16 %v471
    %v562 = vunpack.c.l.b16 %v472
    %v563 = vunpack.c.h.b16 %v472
    %v564 = vunpack.c.l.b16 %v473
    %v565 = vunpack.c.h.b16 %v473
    %v566 = vunpack.c.l.b16 %v474
    %v567 = vunpack.c.h.b16 %v474
    %v568 = vunpack.c.l.b16 %v475
    %v569 = vunpack.c.h.b16 %v475
    %v570 = vunpack.c.l.b16 %v476
    %v571 = vunpack.c.h.b16 %v476
    %v572 = vunpack.c.l.b16 %v477
    %v573 = vunpack.c.h.b16 %v477
    %v574 = vunpack.c.l.b16 %v478
    %v575 = vunpack.c.h.b16 %v478
    %v576 = vunpack.c.l.b16 %v479
    %v577 = vunpack.c.h.b16 %v479
    %v578 = vunpack.c.l.b16 %v480
    %v579 = vunpack.c.h.b16 %v480
    %v580 = vunpack.c.l.b16 %v481
    %v581 = vunpack.c.h.b16 %v481
    %v582 = vunpack.c.l.b16 %v482
    %v583 = vunpack.c.h.b16 %v482
    %v584 = vunpack.c.l.b16 %v483
    %v585 = vunpack.c.h.b16 %v483
    %v586 = vpack.c.b16 %v524, %v522
    %v587 = vpack.c.b16 %v525, %v523
    %v588 = vpack.c.b16 %v528, %v526
    %v589 = vpack.c.b16 %v529, %v527
    %v590 = vpack.c.b16 %v532, %v530
    %v591 = vpack.c.b16 %v533, %v531
    %v592 = vpack.c.b16 %v536, %v534
    %v593 = vpack.c.b16 %v537, %v535
    %v594 = vpack.c.b16 %v540, %v538
    %v595 = vpack.c.b16 %v541, %v539
    %v596 = vpack.c.b16 %v544, %v542
    %v597 = vpack.c.b16 %v545, %v543
    %v598 = vpack.c.b16 %v548, %v546
    %v599 = vpack.c.b16 %v549, %v547
    %v600 = vpack.c.b16 %v552, %v550
    %v601 = vpack.c.b16 %v553, %v551
    %v602 = vpack.c.b16 %v556, %v554
    %v603 = vpack.c.b16 %v557, %v555
    %v604 = vpack.c.b16 %v560, %v558
    %v605 = vpack.c.b16 %v561, %v559
    %v606 = vpack.c.b16 %v564, %v562
    %v607 = vpack.c.b16 %v565, %v563
    %v608 = vpack.c.b16 %v568, %v566
    %v609 = vpack.c.b16 %v569, %v567
    %v610 = vpack.c.b16 %v572, %v570
    %v611 = vpack.c.b16 %v573, %v571
    %v612 = vpack.c.b16 %v576, %v574
    %v613 = vpack.c.b16 %v577, %v575
    %v614 = vpack.c.b16 %v580, %v578
    %v615 = vpack.c.b16 %v581, %v579
    %v616 = vpack.c.b16 %v584, %v582
    %v617 = vpack.c.b16 %v585, %v583
    %650 = vmatpush.bf16.msra.mxu0 %v600
    %651 = vmatpush.bf16.msra.mxu0 %v598
    %652 = vmatpush.bf16.msra.mxu0 %v596
    %653 = vmatpush.bf16.msra.mxu0 %v594
    %654 = vmatpush.bf16.msra.mxu0 %v592
    %655 = vmatpush.bf16.msra.mxu0 %v590
    %656 = vmatpush.bf16.msra.mxu0 %v588
    %657 = vmatpush.bf16.msra.mxu0 %v586
    %658 = vmatmul.bf16.gmra.mxu0 %v450
    %v659 = vpop.f32.mrf.mxu0
    %v660 = vadd.f32 %v486, %v659
    %v661 = vpop.f32.mrf.mxu0
    %662 = vdwg.mxu0
    %663 = vmatpush.bf16.msra.mxu0 %v616
    %664 = vmatpush.bf16.msra.mxu0 %v614
    %665 = vmatpush.bf16.msra.mxu0 %v612
    %666 = vmatpush.bf16.msra.mxu0 %v610
    %667 = vmatpush.bf16.msra.mxu0 %v608
    %668 = vmatpush.bf16.msra.mxu0 %v606
    %669 = vmatpush.bf16.msra.mxu0 %v604
    %670 = vmatpush.bf16.msra.mxu0 %v602
    %671 = vmatmul.bf16.gmra.mxu0 %v451
    %v672 = vpop.f32.mrf.mxu0
    %v673 = vadd.f32 %v660, %v672
    %v674 = vpop.f32.mrf.mxu0
    %675 = vdwg.mxu0
    %676 = vmatpush.bf16.msra.mxu0 %v601
    %677 = vmatpush.bf16.msra.mxu0 %v599
    %678 = vmatpush.bf16.msra.mxu0 %v597
    %679 = vmatpush.bf16.msra.mxu0 %v595
    %680 = vmatpush.bf16.msra.mxu0 %v593
    %681 = vmatpush.bf16.msra.mxu0 %v591
    %682 = vmatpush.bf16.msra.mxu0 %v589
    %683 = vmatpush.bf16.msra.mxu0 %v587
    %684 = vmatmul.bf16.gmra.mxu0 %v450
    %v685 = vpop.f32.mrf.mxu0
    %v686 = vadd.f32 %v487, %v685
    %v687 = vpop.f32.mrf.mxu0
    %688 = vdwg.mxu0
    %689 = vmatpush.bf16.msra.mxu0 %v617
    %690 = vmatpush.bf16.msra.mxu0 %v615
    %691 = vmatpush.bf16.msra.mxu0 %v613
    %692 = vmatpush.bf16.msra.mxu0 %v611
    %693 = vmatpush.bf16.msra.mxu0 %v609
    %694 = vmatpush.bf16.msra.mxu0 %v607
    %695 = vmatpush.bf16.msra.mxu0 %v605
    %696 = vmatpush.bf16.msra.mxu0 %v603
    %697 = vmatmul.bf16.gmra.mxu0 %v451
    %v698 = vpop.f32.mrf.mxu0
    %v699 = vadd.f32 %v686, %v698
    %v700 = vpop.f32.mrf.mxu0
    %701 = vdwg.mxu0
    %v702 = vmax.f32 %v673, 0.0
    %v703 = vmax.f32 %v699, 0.0
    %v704 = vpack.c.bf16 %v702, %v702
    %v705 = vpack.c.bf16 %v703, %v703
    %v706 = vld [vmem:[#allocation11] sm:$0xff]
    %v707 = vld [vmem:[#allocation11 + $0x8] sm:$0xff]
    %v708 = vld [vmem:[#allocation11 + $0x10] sm:$0xff]
    %v709 = vld [vmem:[#allocation11 + $0x18] sm:$0xff]
    %v710 = vld [vmem:[#allocation11 + $0x20] sm:$0xff]
    %v711 = vld [vmem:[#allocation11 + $0x28] sm:$0xff]
    %v712 = vld [vmem:[#allocation11 + $0x30] sm:$0xff]
    %v713 = vld [vmem:[#allocation11 + $0x38] sm:$0xff]
    %v714 = vld [vmem:[#allocation11 + $0x40] sm:$0xff]
    %v715 = vld [vmem:[#allocation11 + $0x48] sm:$0xff]
    %v716 = vld [vmem:[#allocation11 + $0x50] sm:$0xff]
    %v717 = vld [vmem:[#allocation11 + $0x58] sm:$0xff]
    %v718 = vld [vmem:[#allocation11 + $0x60] sm:$0xff]
    %v719 = vld [vmem:[#allocation11 + $0x68] sm:$0xff]
    %v720 = vld [vmem:[#allocation11 + $0x70] sm:$0xff]
    %v721 = vld [vmem:[#allocation11 + $0x78] sm:$0xff]
    %v722 = vld [vmem:[#allocation11 + $0x80] sm:$0xff]
    %v723 = vld [vmem:[#allocation11 + $0x88] sm:$0xff]
    %v724 = vld [vmem:[#allocation11 + $0x90] sm:$0xff]
    %v725 = vld [vmem:[#allocation11 + $0x98] sm:$0xff]
    %v726 = vld [vmem:[#allocation11 + $0xa0] sm:$0xff]
    %v727 = vld [vmem:[#allocation11 + $0xa8] sm:$0xff]
    %v728 = vld [vmem:[#allocation11 + $0xb0] sm:$0xff]
    %v729 = vld [vmem:[#allocation11 + $0xb8] sm:$0xff]
    %v730 = vld [vmem:[#allocation11 + $0xc0] sm:$0xff]
    %v731 = vld [vmem:[#allocation11 + $0xc8] sm:$0xff]
    %v732 = vld [vmem:[#allocation11 + $0xd0] sm:$0xff]
    %v733 = vld [vmem:[#allocation11 + $0xd8] sm:$0xff]
    %v734 = vld [vmem:[#allocation11 + $0xe0] sm:$0xff]
    %v735 = vld [vmem:[#allocation11 + $0xe8] sm:$0xff]
    %v736 = vld [vmem:[#allocation11 + $0xf0] sm:$0xff]
    %v737 = vld [vmem:[#allocation11 + $0xf8] sm:$0xff]
    %v738 = vld [vmem:[%s8] sm:$0x3]
    %v740 = vperm.slane %v738, 0
    %v741 = vperm.slane %v738, 1
    %v776 = vunpack.c.l.b16 %v706
    %v777 = vunpack.c.h.b16 %v706
    %v778 = vunpack.c.l.b16 %v707
    %v779 = vunpack.c.h.b16 %v707
    %v780 = vunpack.c.l.b16 %v708
    %v781 = vunpack.c.h.b16 %v708
    %v782 = vunpack.c.l.b16 %v709
    %v783 = vunpack.c.h.b16 %v709
    %v784 = vunpack.c.l.b16 %v710
    %v785 = vunpack.c.h.b16 %v710
    %v786 = vunpack.c.l.b16 %v711
    %v787 = vunpack.c.h.b16 %v711
    %v788 = vunpack.c.l.b16 %v712
    %v789 = vunpack.c.h.b16 %v712
    %v790 = vunpack.c.l.b16 %v713
    %v791 = vunpack.c.h.b16 %v713
    %v792 = vunpack.c.l.b16 %v714
    %v793 = vunpack.c.h.b16 %v714
    %v794 = vunpack.c.l.b16 %v715
    %v795 = vunpack.c.h.b16 %v715
    %v796 = vunpack.c.l.b16 %v716
    %v797 = vunpack.c.h.b16 %v716
    %v798 = vunpack.c.l.b16 %v717
    %v799 = vunpack.c.h.b16 %v717
    %v800 = vunpack.c.l.b16 %v718
    %v801 = vunpack.c.h.b16 %v718
    %v802 = vunpack.c.l.b16 %v719
    %v803 = vunpack.c.h.b16 %v719
    %v804 = vunpack.c.l.b16 %v720
    %v805 = vunpack.c.h.b16 %v720
    %v806 = vunpack.c.l.b16 %v721
    %v807 = vunpack.c.h.b16 %v721
    %v808 = vunpack.c.l.b16 %v722
    %v809 = vunpack.c.h.b16 %v722
    %v810 = vunpack.c.l.b16 %v723
    %v811 = vunpack.c.h.b16 %v723
    %v812 = vunpack.c.l.b16 %v724
    %v813 = vunpack.c.h.b16 %v724
    %v814 = vunpack.c.l.b16 %v725
    %v815 = vunpack.c.h.b16 %v725
    %v816 = vunpack.c.l.b16 %v726
    %v817 = vunpack.c.h.b16 %v726
    %v818 = vunpack.c.l.b16 %v727
    %v819 = vunpack.c.h.b16 %v727
    %v820 = vunpack.c.l.b16 %v728
    %v821 = vunpack.c.h.b16 %v728
    %v822 = vunpack.c.l.b16 %v729
    %v823 = vunpack.c.h.b16 %v729
    %v824 = vunpack.c.l.b16 %v730
    %v825 = vunpack.c.h.b16 %v730
    %v826 = vunpack.c.l.b16 %v731
    %v827 = vunpack.c.h.b16 %v731
    %v828 = vunpack.c.l.b16 %v732
    %v829 = vunpack.c.h.b16 %v732
    %v830 = vunpack.c.l.b16 %v733
    %v831 = vunpack.c.h.b16 %v733
    %v832 = vunpack.c.l.b16 %v734
    %v833 = vunpack.c.h.b16 %v734
    %v834 = vunpack.c.l.b16 %v735
    %v835 = vunpack.c.h.b16 %v735
    %v836 = vunpack.c.l.b16 %v736
    %v837 = vunpack.c.h.b16 %v736
    %v838 = vunpack.c.l.b16 %v737
    %v839 = vunpack.c.h.b16 %v737
    %v840 = vpack.c.b16 %v778, %v776
    %v841 = vpack.c.b16 %v779, %v777
    %v842 = vpack.c.b16 %v782, %v780
    %v843 = vpack.c.b16 %v783, %v781
    %v844 = vpack.c.b16 %v786, %v784
    %v845 = vpack.c.b16 %v787, %v785
    %v846 = vpack.c.b16 %v790, %v788
    %v847 = vpack.c.b16 %v791, %v789
    %v848 = vpack.c.b16 %v794, %v792
    %v849 = vpack.c.b16 %v795, %v793
    %v850 = vpack.c.b16 %v798, %v796
    %v851 = vpack.c.b16 %v799, %v797
    %v852 = vpack.c.b16 %v802, %v800
    %v853 = vpack.c.b16 %v803, %v801
    %v854 = vpack.c.b16 %v806, %v804
    %v855 = vpack.c.b16 %v807, %v805
    %v856 = vpack.c.b16 %v810, %v808
    %v857 = vpack.c.b16 %v811, %v809
    %v858 = vpack.c.b16 %v814, %v812
    %v859 = vpack.c.b16 %v815, %v813
    %v860 = vpack.c.b16 %v818, %v816
    %v861 = vpack.c.b16 %v819, %v817
    %v862 = vpack.c.b16 %v822, %v820
    %v863 = vpack.c.b16 %v823, %v821
    %v864 = vpack.c.b16 %v826, %v824
    %v865 = vpack.c.b16 %v827, %v825
    %v866 = vpack.c.b16 %v830, %v828
    %v867 = vpack.c.b16 %v831, %v829
    %v868 = vpack.c.b16 %v834, %v832
    %v869 = vpack.c.b16 %v835, %v833
    %v870 = vpack.c.b16 %v838, %v836
    %v871 = vpack.c.b16 %v839, %v837
    %904 = vmatpush.bf16.msra.mxu0 %v854
    %905 = vmatpush.bf16.msra.mxu0 %v852
    %906 = vmatpush.bf16.msra.mxu0 %v850
    %907 = vmatpush.bf16.msra.mxu0 %v848
    %908 = vmatpush.bf16.msra.mxu0 %v846
    %909 = vmatpush.bf16.msra.mxu0 %v844
    %910 = vmatpush.bf16.msra.mxu0 %v842
    %911 = vmatpush.bf16.msra.mxu0 %v840
    %912 = vmatmul.bf16.gmra.mxu0 %v704
    %v913 = vpop.f32.mrf.mxu0
    %v914 = vadd.f32 %v740, %v913
    %v915 = vpop.f32.mrf.mxu0
    %916 = vdwg.mxu0
    %917 = vmatpush.bf16.msra.mxu0 %v870
    %918 = vmatpush.bf16.msra.mxu0 %v868
    %919 = vmatpush.bf16.msra.mxu0 %v866
    %920 = vmatpush.bf16.msra.mxu0 %v864
    %921 = vmatpush.bf16.msra.mxu0 %v862
    %922 = vmatpush.bf16.msra.mxu0 %v860
    %923 = vmatpush.bf16.msra.mxu0 %v858
    %924 = vmatpush.bf16.msra.mxu0 %v856
    %925 = vmatmul.bf16.gmra.mxu0 %v705
    %v926 = vpop.f32.mrf.mxu0
    %v927 = vadd.f32 %v914, %v926
    %v928 = vpop.f32.mrf.mxu0
    %929 = vdwg.mxu0
    %930 = vmatpush.bf16.msra.mxu0 %v855
    %931 = vmatpush.bf16.msra.mxu0 %v853
    %932 = vmatpush.bf16.msra.mxu0 %v851
    %933 = vmatpush.bf16.msra.mxu0 %v849
    %934 = vmatpush.bf16.msra.mxu0 %v847
    %935 = vmatpush.bf16.msra.mxu0 %v845
    %936 = vmatpush.bf16.msra.mxu0 %v843
    %937 = vmatpush.bf16.msra.mxu0 %v841
    %938 = vmatmul.bf16.gmra.mxu0 %v704
    %v939 = vpop.f32.mrf.mxu0
    %v940 = vadd.f32 %v741, %v939
    %v941 = vpop.f32.mrf.mxu0
    %942 = vdwg.mxu0
    %943 = vmatpush.bf16.msra.mxu0 %v871
    %944 = vmatpush.bf16.msra.mxu0 %v869
    %945 = vmatpush.bf16.msra.mxu0 %v867
    %946 = vmatpush.bf16.msra.mxu0 %v865
    %947 = vmatpush.bf16.msra.mxu0 %v863
    %948 = vmatpush.bf16.msra.mxu0 %v861
    %949 = vmatpush.bf16.msra.mxu0 %v859
    %950 = vmatpush.bf16.msra.mxu0 %v857
    %951 = vmatmul.bf16.gmra.mxu0 %v705
    %v952 = vpop.f32.mrf.mxu0
    %v953 = vadd.f32 %v940, %v952
    %v954 = vpop.f32.mrf.mxu0
    %955 = vdwg.mxu0
    %v956 = vmax.f32 %v927, 0.0
    %v957 = vmax.f32 %v953, 0.0
    %v958 = vpack.c.bf16 %v956, %v956
    %v959 = vpack.c.bf16 %v957, %v957
    %v960 = vld [vmem:[#allocation13] sm:$0xf]
    %v961 = vld [vmem:[#allocation13 + $0x4] sm:$0xf]
    %v962 = vld [vmem:[#allocation13 + $0x8] sm:$0xf]
    %v963 = vld [vmem:[#allocation13 + $0xc] sm:$0xf]
    %v964 = vld [vmem:[#allocation13 + $0x10] sm:$0xf]
    %v965 = vld [vmem:[#allocation13 + $0x14] sm:$0xf]
    %v966 = vld [vmem:[#allocation13 + $0x18] sm:$0xf]
    %v967 = vld [vmem:[#allocation13 + $0x1c] sm:$0xf]
    %v968 = vld [vmem:[#allocation13 + $0x20] sm:$0xf]
    %v969 = vld [vmem:[#allocation13 + $0x24] sm:$0xf]
    %v970 = vld [vmem:[#allocation13 + $0x28] sm:$0xf]
    %v971 = vld [vmem:[#allocation13 + $0x2c] sm:$0xf]
    %v972 = vld [vmem:[#allocation13 + $0x30] sm:$0xf]
    %v973 = vld [vmem:[#allocation13 + $0x34] sm:$0xf]
    %v974 = vld [vmem:[#allocation13 + $0x38] sm:$0xf]
    %v975 = vld [vmem:[#allocation13 + $0x3c] sm:$0xf]
    %v976 = vld [vmem:[#allocation13 + $0x40] sm:$0xf]
    %v977 = vld [vmem:[#allocation13 + $0x44] sm:$0xf]
    %v978 = vld [vmem:[#allocation13 + $0x48] sm:$0xf]
    %v979 = vld [vmem:[#allocation13 + $0x4c] sm:$0xf]
    %v980 = vld [vmem:[#allocation13 + $0x50] sm:$0xf]
    %v981 = vld [vmem:[#allocation13 + $0x54] sm:$0xf]
    %v982 = vld [vmem:[#allocation13 + $0x58] sm:$0xf]
    %v983 = vld [vmem:[#allocation13 + $0x5c] sm:$0xf]
    %v984 = vld [vmem:[#allocation13 + $0x60] sm:$0xf]
    %v985 = vld [vmem:[#allocation13 + $0x64] sm:$0xf]
    %v986 = vld [vmem:[#allocation13 + $0x68] sm:$0xf]
    %v987 = vld [vmem:[#allocation13 + $0x6c] sm:$0xf]
    %v988 = vld [vmem:[#allocation13 + $0x70] sm:$0xf]
    %v989 = vld [vmem:[#allocation13 + $0x74] sm:$0xf]
    %v990 = vld [vmem:[#allocation13 + $0x78] sm:$0xf]
    %v991 = vld [vmem:[#allocation13 + $0x7c] sm:$0xf]
    %v992 = vld [vmem:[%s10] sm:$0x1]
    %v994 = vperm.slane %v992, 0
    %v1028 = vunpack.c.l.b16 %v960
    %v1029 = vunpack.c.l.b16 %v961
    %v1030 = vunpack.c.l.b16 %v962
    %v1031 = vunpack.c.l.b16 %v963
    %v1032 = vunpack.c.l.b16 %v964
    %v1033 = vunpack.c.l.b16 %v965
    %v1034 = vunpack.c.l.b16 %v966
    %v1035 = vunpack.c.l.b16 %v967
    %v1036 = vunpack.c.l.b16 %v968
    %v1037 = vunpack.c.l.b16 %v969
    %v1038 = vunpack.c.l.b16 %v970
    %v1039 = vunpack.c.l.b16 %v971
    %v1040 = vunpack.c.l.b16 %v972
    %v1041 = vunpack.c.l.b16 %v973
    %v1042 = vunpack.c.l.b16 %v974
    %v1043 = vunpack.c.l.b16 %v975
    %v1044 = vunpack.c.l.b16 %v976
    %v1045 = vunpack.c.l.b16 %v977
    %v1046 = vunpack.c.l.b16 %v978
    %v1047 = vunpack.c.l.b16 %v979
    %v1048 = vunpack.c.l.b16 %v980
    %v1049 = vunpack.c.l.b16 %v981
    %v1050 = vunpack.c.l.b16 %v982
    %v1051 = vunpack.c.l.b16 %v983
    %v1052 = vunpack.c.l.b16 %v984
    %v1053 = vunpack.c.l.b16 %v985
    %v1054 = vunpack.c.l.b16 %v986
    %v1055 = vunpack.c.l.b16 %v987
    %v1056 = vunpack.c.l.b16 %v988
    %v1057 = vunpack.c.l.b16 %v989
    %v1058 = vunpack.c.l.b16 %v990
    %v1059 = vunpack.c.l.b16 %v991
    %v1060 = vpack.c.b16 %v1029, %v1028
    %v1061 = vpack.c.b16 %v1031, %v1030
    %v1062 = vpack.c.b16 %v1033, %v1032
    %v1063 = vpack.c.b16 %v1035, %v1034
    %v1064 = vpack.c.b16 %v1037, %v1036
    %v1065 = vpack.c.b16 %v1039, %v1038
    %v1066 = vpack.c.b16 %v1041, %v1040
    %v1067 = vpack.c.b16 %v1043, %v1042
    %v1068 = vpack.c.b16 %v1045, %v1044
    %v1069 = vpack.c.b16 %v1047, %v1046
    %v1070 = vpack.c.b16 %v1049, %v1048
    %v1071 = vpack.c.b16 %v1051, %v1050
    %v1072 = vpack.c.b16 %v1053, %v1052
    %v1073 = vpack.c.b16 %v1055, %v1054
    %v1074 = vpack.c.b16 %v1057, %v1056
    %v1075 = vpack.c.b16 %v1059, %v1058
    %1092 = vmatpush.bf16.msra.mxu0 %v1067
    %1093 = vmatpush.bf16.msra.mxu0 %v1066
    %1094 = vmatpush.bf16.msra.mxu0 %v1065
    %1095 = vmatpush.bf16.msra.mxu0 %v1064
    %1096 = vmatpush.bf16.msra.mxu0 %v1063
    %1097 = vmatpush.bf16.msra.mxu0 %v1062
    %1098 = vmatpush.bf16.msra.mxu0 %v1061
    %1099 = vmatpush.bf16.msra.mxu0 %v1060
    %1100 = vmatmul.bf16.gmra.mxu0 %v958
    %v1101 = vpop.f32.mrf.mxu0
    %v1102 = vadd.f32 %v994, %v1101
    %v1103 = vpop.f32.mrf.mxu0
    %1104 = vdwg.mxu0
    %1105 = vmatpush.bf16.msra.mxu0 %v1075
    %1106 = vmatpush.bf16.msra.mxu0 %v1074
    %1107 = vmatpush.bf16.msra.mxu0 %v1073
    %1108 = vmatpush.bf16.msra.mxu0 %v1072
    %1109 = vmatpush.bf16.msra.mxu0 %v1071
    %1110 = vmatpush.bf16.msra.mxu0 %v1070
    %1111 = vmatpush.bf16.msra.mxu0 %v1069
    %1112 = vmatpush.bf16.msra.mxu0 %v1068
    %1113 = vmatmul.bf16.gmra.mxu0 %v959
    %v1114 = vpop.f32.mrf.mxu0
    %v1115 = vadd.f32 %v1102, %v1114
    %v1116 = vpop.f32.mrf.mxu0
    %1117 = vdwg.mxu0
    %1118 = vst [vmem:[#allocation14] sm:$0xff] %v1115
    // Predicated region
    $region74: #{tpu_custom_call.1} parent=1 // pred_check
      _
    $region75: #{tpu_custom_call.1} parent=1 // pred_check_branch
      %1120 = sbr.rel (0) target = $region77
    $region76: #{tpu_custom_call.1} parent=1 // pred_region
      %1122 = vsyncadd [#allocation4], 0
      %s1124 = sshll.u32 [#allocation14], 4
      %s1125 = int_to_ptr.vmem [resolvable:$true] %s1124
      %s1126 = sshll.u32 %s11, 4
      %s1127 = int_to_ptr.hbm [resolvable:$true] %s1126
      %1129 = dma.vmem_to_hbm [thread:$0]  %s1125, 128, %s1127, [#allocation4]
    $region77: #{tpu_custom_call.1} parent=1 // pred_fallthru
      _
    // Predicated region
    $region78: #{tpu_custom_call.1} parent=1 // pred_check
      _
    $region79: #{tpu_custom_call.1} parent=1 // pred_check_branch
      %1131 = sbr.rel (0) target = $region81
    $region80: #{tpu_custom_call.1} parent=1 // pred_region
      %1133 = dma.done [#allocation4], 128
    $region81: #{tpu_custom_call.1} parent=1 // pred_fallthru
      _
    %1134 = vsyncpa [#allocation3], 1
    %1135 = vsyncpa [#allocation6], 1
    %1136 = vsyncpa [#allocation9], 1
    %1137 = vsyncpa [#allocation12], 1
    %1138 = vsyncpa [#allocation4], 1

</llo_original>
